<compile_context>
chip_gen: v7x
topology: tpu7x:2x2x1
jax: 0.10.0
libtpu: 0.0.40
codegen_flags: <defaults>
</compile_context>

<pallas_src>
import functools

import jax
import jax.numpy as jnp
from jax.experimental import pallas as pl
from jax.experimental.pallas import tpu as pltpu

SUBLANE = 8  # vreg sublane count (batch tile granularity)


def _cdiv(a, b):
    return (a + b - 1) // b


def _round_up(n, m):
    return ((n + m - 1) // m) * m


# --------------------------------------------------------------------------
# Kernel: one batch tile ->  y = x @ W + b   (folded two-layer affine map).
# --------------------------------------------------------------------------
def decoder_kernel(x_ref, w_ref, b_ref, o_ref):
    # Cast activations to the weight compute dtype inside the kernel (cheap
    # VPU cast; avoids an extra XLA pass over x). No-op when W is f32.
    x = x_ref[...].astype(w_ref.dtype)
    y = jnp.dot(x, w_ref[...], preferred_element_type=jnp.float32)
    o_ref[...] = (y + b_ref[...]).astype(o_ref.dtype)  # f32 bias add / accum


# --------------------------------------------------------------------------
# One-time weight preparation (outside the inference hot path).
# PyTorch-style weights W1:[hid,in], W2:[out,hid] are folded into a single
# affine map: W = W1^T @ W2^T : [in, out],  b = b1 @ W2^T + b2 : [out].
# --------------------------------------------------------------------------
def prepare_params(params, compute_dtype=jnp.float32):
    w1, b1 = params["l1"]     # [hidden, in], [hidden]
    w2, b2 = params["out"]    # [out, hidden], [out]

    w = (w1.T.astype(jnp.float32) @ w2.T.astype(jnp.float32))       # [in, out]
    b = (b1.astype(jnp.float32) @ w2.T.astype(jnp.float32)
         + b2.astype(jnp.float32))                                   # [out]

    return {
        "w": w.astype(compute_dtype),          # bf16 on v6e/v7x if desired
        "b": b.reshape(1, -1).astype(jnp.float32),  # bias stays f32 (v5e VPU)
    }


# --------------------------------------------------------------------------
# Forward wrapper: batch-tiled pallas_call at the true output width.
# --------------------------------------------------------------------------
@functools.partial(jax.jit, static_argnames=("block_b",))
def decoder_forward(x, w, b, *, block_b=1024):
    B, in_f = x.shape
    out_f = w.shape[1]

    # Batch tile: multiple of 8 sublanes; split B so the grid has >=2
    # programs when possible (both TensorCores on v7x), capped at block_b.
    tb = min(block_b, _round_up(_cdiv(B, 2), SUBLANE))
    tb = max(tb, SUBLANE)
    grid = (_cdiv(B, tb),)   # ragged last tile handled by Pallas masking

    cost = pl.CostEstimate(
        flops=2 * B * in_f * out_f,
        transcendentals=0,
        bytes_accessed=(x.size * x.dtype.itemsize
                        + w.size * w.dtype.itemsize
                        + b.size * b.dtype.itemsize
                        + B * out_f * 4),
    )

    out = pl.pallas_call(
        decoder_kernel,
        out_shape=jax.ShapeDtypeStruct((B, out_f), jnp.float32),
        grid=grid,
        in_specs=[
            pl.BlockSpec((tb, in_f), lambda i: (i, 0)),   # x: tiled over batch
            pl.BlockSpec((in_f, out_f), lambda i: (0, 0)),  # W: VMEM-resident
            pl.BlockSpec((1, out_f), lambda i: (0, 0)),     # b: VMEM-resident
        ],
        out_specs=pl.BlockSpec((tb, out_f), lambda i: (i, 0)),
        compiler_params=pltpu.CompilerParams(
            dimension_semantics=("parallel",)),
        cost_estimate=cost,
    )(x, w, b)

    return out


# --------------------------------------------------------------------------
# Deterministic init mimicking nn.Linear's default
# U(-1/sqrt(fan_in), 1/sqrt(fan_in)) for both weights and biases.
# --------------------------------------------------------------------------
def init_params(key, in_features, hidden_features, out_features):
    def linear(k, fan_in, fan_out):
        kw, kb = jax.random.split(k)
        bound = 1.0 / jnp.sqrt(fan_in)
        w = jax.random.uniform(kw, (fan_out, fan_in), jnp.float32, -bound, bound)
        bb = jax.random.uniform(kb, (fan_out,), jnp.float32, -bound, bound)
        return w, bb

    k1, k2 = jax.random.split(key)
    return {
        "l1": linear(k1, in_features, hidden_features),
        "out": linear(k2, hidden_features, out_features),
    }


if __name__ == "__main__":
    in_features, hidden_features, out_features = 16, 32, 8
    batch = 8

    key = jax.random.PRNGKey(0)
    kx, kparams = jax.random.split(key)
    x = jax.random.normal(kx, (batch, in_features), jnp.float32)
    params = init_params(kparams, in_features, hidden_features, out_features)

    # Pure-JAX reference (same math as the PyTorch module, unfolded).
    w1, b1 = params["l1"]
    w2, b2 = params["out"]
    y_ref = (x @ w1.T + b1) @ w2.T + b2          # act1 = identity

    # --- f32 path (tight tolerance) ---------------------------------------
    p32 = prepare_params(params)                 # one-time fold, off hot path
    y32 = jax.block_until_ready(decoder_forward(x, p32["w"], p32["b"]))
    assert y32.shape == (batch, out_features)
    assert jnp.allclose(y32, y_ref, atol=1e-5, rtol=1e-5)

    # --- bf16 weight/activation path (v6e/v7x MXU-native), looser check ----
    pbf = prepare_params(params, compute_dtype=jnp.bfloat16)
    ybf = jax.block_until_ready(decoder_forward(x, pbf["w"], pbf["b"]))
    assert ybf.shape == (batch, out_features)
    assert jnp.allclose(ybf, y_ref, atol=3e-2, rtol=3e-2)

    print("KERNEL_OK")
</pallas_src>

<mosaic_0001>
module attributes {stable_mosaic.version = 11 : i64} {
  func.func @decoder_kernel(%arg0: i32, %arg1: memref<8x16xf32, #tpu.memory_space<vmem>>, %arg2: memref<16x8xf32, #tpu.memory_space<vmem>>, %arg3: memref<1x8xf32, #tpu.memory_space<vmem>>, %arg4: memref<8x8xf32, #tpu.memory_space<vmem>>) attributes {dimension_semantics = [#tpu.dimension_semantics<parallel>], iteration_bounds = array<i64: 1>, scalar_prefetch = 0 : i64, scratch_operands = 0 : i64, tpu.core_type = #tpu.core_type<tc>, window_params = [{transform_indices = @transform_0, window_bounds = array<i64: 8, 16>}, {pipeline_mode = #tpu.pipeline_mode<synchronous>, transform_indices = @transform_1, window_bounds = array<i64: 16, 8>}, {pipeline_mode = #tpu.pipeline_mode<synchronous>, transform_indices = @transform_2, window_bounds = array<i64: 1, 8>}, {transform_indices = @transform_3, window_bounds = array<i64: 8, 8>}]} {
    %c0 = arith.constant 0 : index
    %c0_0 = arith.constant 0 : index
    %0 = vector.load %arg1[%c0, %c0_0] : memref<8x16xf32, #tpu.memory_space<vmem>>, vector<8x16xf32>
    %c0_1 = arith.constant 0 : index
    %c0_2 = arith.constant 0 : index
    %1 = vector.load %arg2[%c0_1, %c0_2] : memref<16x8xf32, #tpu.memory_space<vmem>>, vector<16x8xf32>
    %cst = arith.constant dense<0.000000e+00> : vector<8x8xf32>
    %2 = tpu.matmul %0, %1, %cst {dimension_numbers = #tpu.dot_dimension_numbers<[1], [0], [0], [1], [0, 0, 1, 1], [], []>} : vector<8x16xf32>, vector<16x8xf32>, vector<8x8xf32> -> vector<8x8xf32>
    %c0_3 = arith.constant 0 : index
    %c0_4 = arith.constant 0 : index
    %3 = vector.load %arg3[%c0_3, %c0_4] : memref<1x8xf32, #tpu.memory_space<vmem>>, vector<1x8xf32>
    %4 = vector.broadcast %3 : vector<1x8xf32> to vector<8x8xf32>
    %5 = arith.addf %2, %4 : vector<8x8xf32>
    %c0_5 = arith.constant 0 : index
    %c0_6 = arith.constant 0 : index
    %6 = vector.load %arg4[%c0_5, %c0_6] : memref<8x8xf32, #tpu.memory_space<vmem>>, vector<8x8xf32>
    tpu.vector_store %arg4[%c0_5, %c0_6], %5 {strides = array<i32>} : memref<8x8xf32, #tpu.memory_space<vmem>>, vector<8x8xf32>,
    return
  }
  func.func @transform_0(%arg0: i32) -> (i32, i32) {
    %c0_i32 = arith.constant 0 : i32
    %c0_i32_0 = arith.constant 0 : i32
    return %arg0, %c0_i32 : i32, i32
  }
  func.func @transform_1(%arg0: i32) -> (i32, i32) {
    %c0_i32 = arith.constant 0 : i32
    %c0_i32_0 = arith.constant 0 : i32
    %c0_i32_1 = arith.constant 0 : i32
    return %c0_i32, %c0_i32_0 : i32, i32
  }
  func.func @transform_2(%arg0: i32) -> (i32, i32) {
    %c0_i32 = arith.constant 0 : i32
    %c0_i32_0 = arith.constant 0 : i32
    %c0_i32_1 = arith.constant 0 : i32
    return %c0_i32, %c0_i32_0 : i32, i32
  }
  func.func @transform_3(%arg0: i32) -> (i32, i32) {
    %c0_i32 = arith.constant 0 : i32
    %c0_i32_0 = arith.constant 0 : i32
    return %arg0, %c0_i32 : i32, i32
  }
}

</mosaic_0001>

<llo_original>
// kernel: decoder_forward.1
$region0: #{decoder_forward.1}
  #allocation0 [shape = 'u32[]', space=smem, size = 0x4, offset = 0x4, fixed_abs, tag = 'smem constant byte address 0x4 - core index']
  #allocation1 [shape = 'u32[144,128]{1,0:T(1,128)}', space=vmem, size = 0x12000, scoped, tag = 'internal scratch']
  %s0 = inlined_call_operand.vmem [shape: f32[8,16], index: 0, kind: input, shape index: {}]
  %s1 = inlined_call_operand.vmem [shape: f32[16,8], index: 1, kind: input, shape index: {}]
  %s2 = inlined_call_operand.vmem [shape: f32[1,8], index: 2, kind: input, shape index: {}]
  %s3 = inlined_call_operand.hbm [shape: f32[8,8], index: 3, kind: output, shape index: {}]
  %s4 = sld [smem:[#allocation0]]
  $region22: #{decoder_forward.1} parent=0
    _
  %s6 = ssub.s32 1, %s4
  %s7 = scalar_select 0, %s6, %s4
  $region1: #{decoder_forward.1} parent=0
    #allocation2 [shape = 'u8[4096]{0}', space=vmem, size = 0x1000, scoped, tag = 'output window, operand 0, single buffered']
    #allocation3 [shape = 's32[1]{0}', space=sflag, size = 0x4, scoped, tag = 'scoped memory for decoder_forward.1']
    %8 = vsyncpa [#allocation3], 0
    // Predicated region
    $region2: #{decoder_forward.1} parent=1 // pred_check
      _
    $region3: #{decoder_forward.1} parent=1 // pred_check_branch
      %10 = sbr.rel (0) target = $region5
    $region4: #{decoder_forward.1} parent=1 // pred_region
      _
    $region5: #{decoder_forward.1} parent=1 // pred_fallthru
      _
    // Predicated region
    $region6: #{decoder_forward.1} parent=1 // pred_check
      _
    $region7: #{decoder_forward.1} parent=1 // pred_check_branch
      %12 = sbr.rel (0) target = $region9
    $region8: #{decoder_forward.1} parent=1 // pred_region
      _
    $region9: #{decoder_forward.1} parent=1 // pred_fallthru
      _
    // Predicated region
    $region10: #{decoder_forward.1} parent=1 // pred_check
      _
    $region11: #{decoder_forward.1} parent=1 // pred_check_branch
      %14 = sbr.rel (0) target = $region13
    $region12: #{decoder_forward.1} parent=1 // pred_region
      _
    $region13: #{decoder_forward.1} parent=1 // pred_fallthru
      _
    %v15 = vld [vmem:[%s0] sm:$0xff]
    %v16 = vld [vmem:[%s1] sm:$0xff]
    %v17 = vld [vmem:[%s1 + $0x8] sm:$0xff]
    %v18 = vld [vmem:[%s2] sm:$0x1]
    %v20 = vlaneseq
    %v21 = vshrl.u32 %v20, 7
    %v22 = vsub.s32 0, %v21
    %v23 = vrot.slane %v18, %v22
    %vm25 = vcmask 130048
    %v27 = vsel %vm25, %v15, 0
    %29 = vmatprep.subr.mxu0 0.0
    %30 = vmatpush1.msra.mxu0 %v16
    %31 = vmatprep.subr.mxu0 0.0
    %32 = vmatpush1.msra.mxu0 %v17
    %33 = vmatprep.subr.mxu0 0.0
    %34 = vmatpush1.msra.mxu0 0.0
    %35 = vmatprep.subr.mxu0 0.0
    %36 = vmatpush1.msra.mxu0 0.0
    %37 = vmatprep.subr.mxu0 0.0
    %38 = vmatpush1.msra.mxu0 0.0
    %39 = vmatprep.subr.mxu0 0.0
    %40 = vmatpush1.msra.mxu0 0.0
    %41 = vmatprep.subr.mxu0 0.0
    %42 = vmatpush1.msra.mxu0 0.0
    %43 = vmatprep.subr.mxu0 0.0
    %44 = vmatpush1.msra.mxu0 0.0
    %45 = vmatprep.subr.mxu0 0.0
    %46 = vmatpush1.msra.mxu0 0.0
    %47 = vmatprep.subr.mxu0 0.0
    %48 = vmatpush1.msra.mxu0 0.0
    %49 = vmatprep.subr.mxu0 0.0
    %50 = vmatpush1.msra.mxu0 0.0
    %51 = vmatprep.subr.mxu0 0.0
    %52 = vmatpush1.msra.mxu0 0.0
    %53 = vmatprep.subr.mxu0 0.0
    %54 = vmatpush1.msra.mxu0 0.0
    %55 = vmatprep.subr.mxu0 0.0
    %56 = vmatpush1.msra.mxu0 0.0
    %57 = vmatprep.subr.mxu0 0.0
    %58 = vmatpush1.msra.mxu0 0.0
    %59 = vmatprep.subr.mxu0 0.0
    %60 = vmatpush1.msra.mxu0 0.0
    %61 = vmatprep.subr.mxu0 0.0
    %62 = vmatpush1.msra.mxu0 0.0
    %63 = vmatprep.subr.mxu0 0.0
    %64 = vmatpush1.msra.mxu0 0.0
    %65 = vmatprep.subr.mxu0 0.0
    %66 = vmatpush1.msra.mxu0 0.0
    %67 = vmatprep.subr.mxu0 0.0
    %68 = vmatpush1.msra.mxu0 0.0
    %69 = vmatprep.subr.mxu0 0.0
    %70 = vmatpush1.msra.mxu0 0.0
    %71 = vmatprep.subr.mxu0 0.0
    %72 = vmatpush1.msra.mxu0 0.0
    %73 = vmatprep.subr.mxu0 0.0
    %74 = vmatpush1.msra.mxu0 0.0
    %75 = vmatprep.subr.mxu0 0.0
    %76 = vmatpush1.msra.mxu0 0.0
    %77 = vmatprep.subr.mxu0 0.0
    %78 = vmatpush1.msra.mxu0 0.0
    %79 = vmatprep.subr.mxu0 0.0
    %80 = vmatpush1.msra.mxu0 0.0
    %81 = vmatprep.subr.mxu0 0.0
    %82 = vmatpush1.msra.mxu0 0.0
    %83 = vmatprep.subr.mxu0 0.0
    %84 = vmatpush1.msra.mxu0 0.0
    %85 = vmatprep.subr.mxu0 0.0
    %86 = vmatpush1.msra.mxu0 0.0
    %87 = vmatprep.subr.mxu0 0.0
    %88 = vmatpush1.msra.mxu0 0.0
    %89 = vmatprep.subr.mxu0 0.0
    %90 = vmatpush1.msra.mxu0 0.0
    %91 = vmatprep.subr.mxu0 0.0
    %92 = vmatpush1.msra.mxu0 0.0
    %93 = vmatprep.mubr.f32.mxu0 0.0
    %94 = vmatmul.mubr.f32.gmra.mrb[0].mxu0 %v27
    %v95 = vpop.f32.mrb[0].mxu0
    %v96 = vadd.f32 %v23, %v95
    %v97 = vpop.f32.mrb[0].mxu0
    %98 = vdwg.mxu0
    %vm99 = vcmask 64512
    %100 = vst.msk [vmem:[#allocation2] sm:$0xff] %vm99, %v96
    // Predicated region
    $region14: #{decoder_forward.1} parent=1 // pred_check
      _
    $region15: #{decoder_forward.1} parent=1 // pred_check_branch
      %102 = sbr.rel (0) target = $region17
    $region16: #{decoder_forward.1} parent=1 // pred_region
      %s104 = ssub.s32 128, 128
      %105 = vsyncadd [#allocation3], %s104
      %s107 = sshll.u32 [#allocation2], 4
      %s108 = int_to_ptr.vmem [resolvable:$true] %s107
      %110 = dma.vmem_to_hbm [thread:$0]  %s108, 128, %s3, [#allocation3]
    $region17: #{decoder_forward.1} parent=1 // pred_fallthru
      _
    // Predicated region
    $region18: #{decoder_forward.1} parent=1 // pred_check
      _
    $region19: #{decoder_forward.1} parent=1 // pred_check_branch
      %112 = sbr.rel (0) target = $region21
    $region20: #{decoder_forward.1} parent=1 // pred_region
      %113 = dma.done [#allocation3], 128
    $region21: #{decoder_forward.1} parent=1 // pred_fallthru
      _
    %114 = vsyncpa [#allocation3], 1

</llo_original>
